<compile_context>
chip_gen: v5e
topology: v5e:2x2
jax: 0.10.0
libtpu: 0.0.40
codegen_flags: <defaults>
</compile_context>

<pallas_src>
import jax
import jax.numpy as jnp
from jax.experimental import pallas as pl
from jax.experimental.pallas import tpu as pltpu


def _round_up(n, m):
    return ((n + m - 1) // m) * m


def _pick_batch_tile(batch_size, seq_len, max_rows=512):
    """Largest divisor of batch_size whose packed row count (tile*T) fits max_rows."""
    tb = 1
    for d in range(1, batch_size + 1):
        if batch_size % d == 0 and d * seq_len <= max_rows:
            tb = d
    return tb


# ----------------------------------------------------------------------------
# fused Pallas kernel: all QRNN layers + final linear, TB batch elements / step
# ----------------------------------------------------------------------------
def qrnn_fused_kernel(x_ref, w_ref, b_ref, wl_ref, bl_ref, out_ref):
    """
    x_ref  : (TB, T, Dp)           embedded input for this batch tile (padded)
    w_ref  : (L, 2*Dp, 3*Dp)       fused per-layer gate weights (taps stacked on rows,
                                   gates z|f|o stacked on columns), VMEM-resident
    b_ref  : (L, 1, 3*Dp)          fused per-layer gate biases
    wl_ref : (TB*T, Dp)            final linear weight, reshaped/padded/tiled over TB
    bl_ref : (TB, 1, 1)            final linear bias (broadcast over batch)
    out_ref: (TB, 1, 1)            logits for this batch tile
    """
    tb, T, dp = x_ref.shape
    n_layers = w_ref.shape[0]
    rows = tb * T

    # pack (batch, time) into the sublane/row axis; reshape only merges major dims
    cur = x_ref[...].reshape(rows, dp)                # [TB*T, Dp] f32
    c = jnp.zeros((rows, dp), jnp.float32)

    # rows where t == 0 within each packed sequence (causal left pad + batch fence)
    row_ids = jax.lax.broadcasted_iota(jnp.int32, (rows, dp), 0)
    seq_start = (row_ids % T) == 0

    for l in range(n_layers):                         # static unroll; weights stay resident
        # causal 1-step time shift in-kernel (XLU roll + mask); the mask zeroes
        # both the t==0 pad row and any wrap from the previous packed sequence.
        xs = pltpu.roll(cur, 1, 0)                    # xs[i] = cur[i-1]
        xs = jnp.where(seq_start, 0.0, xs)

        # fused conv: one MXU matmul for both taps and all three gates
        xcat = jnp.concatenate([xs, cur], axis=-1)    # [TB*T, 2*Dp]
        gates = (jnp.dot(xcat.astype(w_ref.dtype), w_ref[l],
                         preferred_element_type=jnp.float32)
                 + b_ref[l])                          # [TB*T, 3*Dp], f32

        z = jnp.tanh(gates[:, :dp])
        f = jax.nn.sigmoid(gates[:, dp:2 * dp])       # eval-mode dropout == identity
        o = jax.nn.sigmoid(gates[:, 2 * dp:])

        c = f * c + (1.0 - f) * z                     # elementwise "pool" (as in the module)
        cur = o * c                                   # h -> next layer's input

    # final Linear(seq_len*n_filters -> 1): VPU multiply + lane/sublane reductions
    prod = (cur * wl_ref[...]).reshape(tb, T, dp)     # free major-dim split
    r = jnp.sum(prod, axis=2, keepdims=True)          # lane reduce    -> (TB, T, 1)
    r = jnp.sum(r, axis=1, keepdims=True)             # sublane reduce -> (TB, 1, 1)
    out_ref[...] = r + bl_ref[...]


# ----------------------------------------------------------------------------
# wrapper
# ----------------------------------------------------------------------------
def qrnn_forward(tokens, params, *, n_layers, batch_size, seq_len, n_filters,
                 matmul_dtype=jnp.float32):
    """Mirror of QRNN.forward (eval mode).  Returns logits [B, 1].

    matmul_dtype: set to jnp.bfloat16 on v6e/v7x for MXU-native operands
    (accumulation stays f32); default f32 keeps bit-tight numerics.
    """
    assert n_layers >= 1
    emb = params["embedding"]                         # [V, E]
    E = emb.shape[1]
    # module uses input_size = n_filters for every layer when n_layers != 0,
    # which requires embed_size == n_filters
    assert E == n_filters, "QRNN module requires embed_size == n_filters"

    dp = _round_up(n_filters, 128)                    # lane-dense padded channel width
    tb = _pick_batch_tile(batch_size, seq_len)        # batch elements per grid step
    rows = tb * seq_len

    # embedding gather = plain-JAX glue (no clean BlockSpec expression)
    x = emb[tokens]                                   # [B, T, E]
    x_p = jnp.pad(x, ((0, 0), (0, 0), (0, dp - E))).astype(jnp.float32)

    # --- build fused, padded gate weights: [L, 2*Dp, 3*Dp] and biases [L, 1, 3*Dp]
    def _pad2(m):
        r, c = m.shape
        return jnp.pad(m, ((0, dp - r), (0, dp - c)))

    w_list, b_list = [], []
    for lp in params["layers"]:
        tops, bots, bs = [], [], []
        for g in ("1", "2", "3"):
            w = lp["w" + g]                           # torch conv1d weight [F, C, 2]
            b = lp["b" + g]                           # [F]
            tops.append(_pad2(w[:, :, 0].T))          # tap k=0 acts on x[t-1]
            bots.append(_pad2(w[:, :, 1].T))          # tap k=1 acts on x[t]
            bs.append(jnp.pad(b, (0, dp - b.shape[0])))
        top = jnp.concatenate(tops, axis=1)           # [Dp, 3*Dp]
        bot = jnp.concatenate(bots, axis=1)           # [Dp, 3*Dp]
        w_list.append(jnp.concatenate([top, bot], axis=0))     # [2*Dp, 3*Dp]
        b_list.append(jnp.concatenate(bs).reshape(1, 3 * dp))
    w_fused = jnp.stack(w_list).astype(matmul_dtype)  # [L, 2*Dp, 3*Dp]
    b_fused = jnp.stack(b_list).astype(jnp.float32)   # [L, 1, 3*Dp]

    # final linear weight reshaped to [T, F] (h.view(B, T*F) layout), padded,
    # and tiled over the batch tile so row i of the packed slab uses wl[i % T]
    wl = params["lin_w"].reshape(seq_len, n_filters)
    wl_pad = jnp.pad(wl, ((0, 0), (0, dp - n_filters))).astype(jnp.float32)
    wl_tiled = jnp.tile(wl_pad, (tb, 1))              # [TB*T, Dp]
    bl = jnp.broadcast_to(
        params["lin_b"].reshape(1, 1, 1).astype(jnp.float32), (batch_size, 1, 1))

    out = pl.pallas_call(
        qrnn_fused_kernel,
        grid=(batch_size // tb,),
        in_specs=[
            pl.BlockSpec((tb, seq_len, dp), lambda b: (b, 0, 0)),            # x (per-tile)
            pl.BlockSpec((n_layers, 2 * dp, 3 * dp), lambda b: (0, 0, 0)),   # weights (resident)
            pl.BlockSpec((n_layers, 1, 3 * dp), lambda b: (0, 0, 0)),        # biases (resident)
            pl.BlockSpec((rows, dp), lambda b: (0, 0)),                      # linear weight
            pl.BlockSpec((tb, 1, 1), lambda b: (b, 0, 0)),                   # linear bias
        ],
        out_specs=pl.BlockSpec((tb, 1, 1), lambda b: (b, 0, 0)),
        out_shape=jax.ShapeDtypeStruct((batch_size, 1, 1), jnp.float32),
        compiler_params=pltpu.CompilerParams(
            dimension_semantics=("parallel",)),
    )(x_p, w_fused, b_fused, wl_tiled, bl)

    return out.reshape(batch_size, 1)


# ----------------------------------------------------------------------------
# pure-JAX reference (for the correctness check)
# ----------------------------------------------------------------------------
def qrnn_reference(tokens, params, *, n_layers, batch_size, seq_len, n_filters):
    x = params["embedding"][tokens]
    c = jnp.zeros((batch_size, seq_len, n_filters), jnp.float32)
    masked_input = x
    for l in range(n_layers):
        p = params["layers"][l]
        B, T, C = masked_input.shape
        xs = jnp.concatenate(
            [jnp.zeros((B, 1, C), masked_input.dtype), masked_input[:, :-1, :]], axis=1)

        def conv(w, b):
            return (jnp.einsum("btc,fc->btf", xs, w[:, :, 0])
                    + jnp.einsum("btc,fc->btf", masked_input, w[:, :, 1]) + b)

        z = jnp.tanh(conv(p["w1"], p["b1"]))
        f = jax.nn.sigmoid(conv(p["w2"], p["b2"]))
        o = jax.nn.sigmoid(conv(p["w3"], p["b3"]))
        c = f * c + (1.0 - f) * z
        h = o * c
        masked_input = h
    dense = masked_input.reshape(batch_size, seq_len * n_filters)
    return dense @ params["lin_w"] + params["lin_b"]


# ----------------------------------------------------------------------------
# main
# ----------------------------------------------------------------------------
if __name__ == "__main__":
    # small, self-consistent config (kernel_size must be 2 for QRNN shapes to
    # line up; embed_size == n_filters so the first layer's conv input matches)
    vocab_size, embed_size, n_filters = 32, 32, 32
    kernel_size, batch_size, seq_len, n_layers = 2, 2, 8, 2

    key = jax.random.PRNGKey(0)
    keys = jax.random.split(key, 3 + 6 * n_layers)

    params = {
        "embedding": 0.1 * jax.random.normal(keys[0], (vocab_size, embed_size), jnp.float32),
        "lin_w": 0.1 * jax.random.normal(keys[1], (seq_len * n_filters, 1), jnp.float32),
        "lin_b": 0.1 * jax.random.normal(keys[2], (1, 1), jnp.float32),
        "layers": [],
    }
    for l in range(n_layers):
        kb = 3 + 6 * l
        in_size = n_filters  # (== embed_size; matches the torch module when n_layers != 0)
        layer = {
            "w1": 0.2 * jax.random.normal(keys[kb + 0], (n_filters, in_size, kernel_size), jnp.float32),
            "b1": 0.1 * jax.random.normal(keys[kb + 1], (n_filters,), jnp.float32),
            "w2": 0.2 * jax.random.normal(keys[kb + 2], (n_filters, in_size, kernel_size), jnp.float32),
            "b2": 0.1 * jax.random.normal(keys[kb + 3], (n_filters,), jnp.float32),
            "w3": 0.2 * jax.random.normal(keys[kb + 4], (n_filters, in_size, kernel_size), jnp.float32),
            "b3": 0.1 * jax.random.normal(keys[kb + 5], (n_filters,), jnp.float32),
        }
        params["layers"].append(layer)

    tokens = jax.random.randint(jax.random.PRNGKey(42), (batch_size, seq_len), 0, vocab_size)

    logits = qrnn_forward(tokens, params, n_layers=n_layers, batch_size=batch_size,
                          seq_len=seq_len, n_filters=n_filters)
    logits = jax.block_until_ready(logits)

    ref = qrnn_reference(tokens, params, n_layers=n_layers, batch_size=batch_size,
                         seq_len=seq_len, n_filters=n_filters)
    assert logits.shape == (batch_size, 1)
    assert jnp.allclose(logits, ref, rtol=1e-4, atol=1e-4), (logits, ref)

    print("KERNEL_OK")
</pallas_src>

<mosaic_0001>
module attributes {stable_mosaic.version = 11 : i64} {
  func.func @qrnn_fused_kernel(%arg0: i32, %arg1: memref<2x8x128xf32, #tpu.memory_space<vmem>>, %arg2: memref<2x256x384xf32, #tpu.memory_space<vmem>>, %arg3: memref<2x1x384xf32, #tpu.memory_space<vmem>>, %arg4: memref<16x128xf32, #tpu.memory_space<vmem>>, %arg5: memref<2x1x1xf32, #tpu.memory_space<vmem>>, %arg6: memref<2x1x1xf32, #tpu.memory_space<vmem>>) attributes {dimension_semantics = [#tpu.dimension_semantics<parallel>], iteration_bounds = array<i64: 1>, scalar_prefetch = 0 : i64, scratch_operands = 0 : i64, tpu.core_type = #tpu.core_type<tc>, window_params = [{transform_indices = @transform_0, window_bounds = array<i64: 2, 8, 128>}, {pipeline_mode = #tpu.pipeline_mode<synchronous>, transform_indices = @transform_1, window_bounds = array<i64: 2, 256, 384>}, {pipeline_mode = #tpu.pipeline_mode<synchronous>, transform_indices = @transform_2, window_bounds = array<i64: 2, 1, 384>}, {pipeline_mode = #tpu.pipeline_mode<synchronous>, transform_indices = @transform_3, window_bounds = array<i64: 16, 128>}, {transform_indices = @transform_4, window_bounds = array<i64: 2, 1, 1>}, {transform_indices = @transform_5, window_bounds = array<i64: 2, 1, 1>}]} {
    %c0 = arith.constant 0 : index
    %c0_0 = arith.constant 0 : index
    %c0_1 = arith.constant 0 : index
    %0 = vector.load %arg1[%c0, %c0_0, %c0_1] : memref<2x8x128xf32, #tpu.memory_space<vmem>>, vector<2x8x128xf32>
    %1 = vector.shape_cast %0 : vector<2x8x128xf32> to vector<16x128xf32>
    %cst = arith.constant 0.000000e+00 : f32
    %2 = vector.broadcast %cst : f32 to vector<16x128xf32>
    %3 = tpu.iota {dimensions = array<i32: 0>} : vector<16x128xi32>
    %c8_i32 = arith.constant 8 : i32
    %c0_i32 = arith.constant 0 : i32
    %4 = arith.cmpi eq, %c8_i32, %c0_i32 : i32
    %c1_i32 = arith.constant 1 : i32
    %5 = arith.select %4, %c1_i32, %c8_i32 : i32
    %6 = vector.broadcast %5 : i32 to vector<16x128xi32>
    %7 = arith.remsi %3, %6 : vector<16x128xi32>
    %c0_i32_2 = arith.constant 0 : i32
    %8 = vector.broadcast %c0_i32_2 : i32 to vector<16x128xi32>
    %9 = arith.cmpi ne, %7, %8 : vector<16x128xi32>
    %c0_i32_3 = arith.constant 0 : i32
    %10 = vector.broadcast %c0_i32_3 : i32 to vector<16x128xi32>
    %11 = arith.cmpi slt, %7, %10 : vector<16x128xi32>
    %c0_i32_4 = arith.constant 0 : i32
    %12 = arith.cmpi slt, %5, %c0_i32_4 : i32
    %13 = vector.broadcast %12 : i1 to vector<16x128xi1>
    %14 = vector.broadcast %13 : vector<16x128xi1> to vector<16x128xi1>
    %15 = arith.xori %11, %14 : vector<16x128xi1>
    %16 = arith.andi %15, %9 : vector<16x128xi1>
    %17 = vector.broadcast %5 : i32 to vector<16x128xi32>
    %18 = arith.addi %7, %17 : vector<16x128xi32>
    %19 = arith.select %16, %18, %7 : vector<16x128xi1>, vector<16x128xi32>
    %c0_i32_5 = arith.constant 0 : i32
    %20 = vector.broadcast %c0_i32_5 : i32 to vector<16x128xi32>
    %21 = arith.cmpi eq, %19, %20 : vector<16x128xi32>
    %c1_i32_6 = arith.constant 1 : i32
    %22 = tpu.dynamic_rotate %1 by %c1_i32_6 dim 0 : vector<16x128xf32>, i32 -> vector<16x128xf32>
    %cst_7 = arith.constant 0.000000e+00 : f32
    %23 = vector.broadcast %cst_7 : f32 to vector<16x128xf32>
    %24 = arith.select %21, %23, %22 : vector<16x128xi1>, vector<16x128xf32>
    %25 = tpu.concatenate %24, %1 in 1 : vector<16x128xf32>, vector<16x128xf32> -> vector<16x256xf32>
    %c0_8 = arith.constant 0 : index
    %c0_9 = arith.constant 0 : index
    %c0_10 = arith.constant 0 : index
    %26 = vector.load %arg2[%c0_8, %c0_9, %c0_10] : memref<2x256x384xf32, #tpu.memory_space<vmem>>, vector<1x256x384xf32>
    %27 = vector.shape_cast %26 : vector<1x256x384xf32> to vector<256x384xf32>
    %cst_11 = arith.constant dense<0.000000e+00> : vector<16x384xf32>
    %28 = tpu.matmul %25, %27, %cst_11 {dimension_numbers = #tpu.dot_dimension_numbers<[1], [0], [0], [1], [0, 0, 1, 1], [], []>} : vector<16x256xf32>, vector<256x384xf32>, vector<16x384xf32> -> vector<16x384xf32>
    %c0_12 = arith.constant 0 : index
    %c0_13 = arith.constant 0 : index
    %c0_14 = arith.constant 0 : index
    %29 = vector.load %arg3[%c0_12, %c0_13, %c0_14] : memref<2x1x384xf32, #tpu.memory_space<vmem>>, vector<1x1x384xf32>
    %30 = vector.shape_cast %29 : vector<1x1x384xf32> to vector<1x384xf32>
    %31 = vector.broadcast %30 : vector<1x384xf32> to vector<16x384xf32>
    %32 = arith.addf %28, %31 : vector<16x384xf32>
    %33 = vector.extract_strided_slice %32 {offsets = [0, 0], sizes = [16, 128], strides = [1, 1]} : vector<16x384xf32> to vector<16x128xf32>
    %34 = math.tanh %33 : vector<16x128xf32>
    %35 = vector.extract_strided_slice %32 {offsets = [0, 128], sizes = [16, 128], strides = [1, 1]} : vector<16x384xf32> to vector<16x128xf32>
    %36 = arith.negf %35 : vector<16x128xf32>
    %37 = math.exp %36 : vector<16x128xf32>
    %cst_15 = arith.constant 1.000000e+00 : f32
    %38 = vector.broadcast %cst_15 : f32 to vector<16x128xf32>
    %39 = arith.addf %38, %37 : vector<16x128xf32>
    %40 = arith.divf %38, %39 : vector<16x128xf32>
    %41 = vector.extract_strided_slice %32 {offsets = [0, 256], sizes = [16, 128], strides = [1, 1]} : vector<16x384xf32> to vector<16x128xf32>
    %42 = arith.negf %41 : vector<16x128xf32>
    %43 = math.exp %42 : vector<16x128xf32>
    %cst_16 = arith.constant 1.000000e+00 : f32
    %44 = vector.broadcast %cst_16 : f32 to vector<16x128xf32>
    %45 = arith.addf %44, %43 : vector<16x128xf32>
    %46 = arith.divf %44, %45 : vector<16x128xf32>
    %47 = arith.mulf %40, %2 : vector<16x128xf32>
    %cst_17 = arith.constant 1.000000e+00 : f32
    %48 = vector.broadcast %cst_17 : f32 to vector<16x128xf32>
    %49 = arith.subf %48, %40 : vector<16x128xf32>
    %50 = arith.mulf %49, %34 : vector<16x128xf32>
    %51 = arith.addf %47, %50 : vector<16x128xf32>
    %52 = arith.mulf %46, %51 : vector<16x128xf32>
    %c1_i32_18 = arith.constant 1 : i32
    %53 = tpu.dynamic_rotate %52 by %c1_i32_18 dim 0 : vector<16x128xf32>, i32 -> vector<16x128xf32>
    %cst_19 = arith.constant 0.000000e+00 : f32
    %54 = vector.broadcast %cst_19 : f32 to vector<16x128xf32>
    %55 = arith.select %21, %54, %53 : vector<16x128xi1>, vector<16x128xf32>
    %56 = tpu.concatenate %55, %52 in 1 : vector<16x128xf32>, vector<16x128xf32> -> vector<16x256xf32>
    %c1 = arith.constant 1 : index
    %c0_20 = arith.constant 0 : index
    %c0_21 = arith.constant 0 : index
    %57 = vector.load %arg2[%c1, %c0_20, %c0_21] : memref<2x256x384xf32, #tpu.memory_space<vmem>>, vector<1x256x384xf32>
    %58 = vector.shape_cast %57 : vector<1x256x384xf32> to vector<256x384xf32>
    %cst_22 = arith.constant dense<0.000000e+00> : vector<16x384xf32>
    %59 = tpu.matmul %56, %58, %cst_22 {dimension_numbers = #tpu.dot_dimension_numbers<[1], [0], [0], [1], [0, 0, 1, 1], [], []>} : vector<16x256xf32>, vector<256x384xf32>, vector<16x384xf32> -> vector<16x384xf32>
    %c1_23 = arith.constant 1 : index
    %c0_24 = arith.constant 0 : index
    %c0_25 = arith.constant 0 : index
    %60 = vector.load %arg3[%c1_23, %c0_24, %c0_25] : memref<2x1x384xf32, #tpu.memory_space<vmem>>, vector<1x1x384xf32>
    %61 = vector.shape_cast %60 : vector<1x1x384xf32> to vector<1x384xf32>
    %62 = vector.broadcast %61 : vector<1x384xf32> to vector<16x384xf32>
    %63 = arith.addf %59, %62 : vector<16x384xf32>
    %64 = vector.extract_strided_slice %63 {offsets = [0, 0], sizes = [16, 128], strides = [1, 1]} : vector<16x384xf32> to vector<16x128xf32>
    %65 = math.tanh %64 : vector<16x128xf32>
    %66 = vector.extract_strided_slice %63 {offsets = [0, 128], sizes = [16, 128], strides = [1, 1]} : vector<16x384xf32> to vector<16x128xf32>
    %67 = arith.negf %66 : vector<16x128xf32>
    %68 = math.exp %67 : vector<16x128xf32>
    %cst_26 = arith.constant 1.000000e+00 : f32
    %69 = vector.broadcast %cst_26 : f32 to vector<16x128xf32>
    %70 = arith.addf %69, %68 : vector<16x128xf32>
    %71 = arith.divf %69, %70 : vector<16x128xf32>
    %72 = vector.extract_strided_slice %63 {offsets = [0, 256], sizes = [16, 128], strides = [1, 1]} : vector<16x384xf32> to vector<16x128xf32>
    %73 = arith.negf %72 : vector<16x128xf32>
    %74 = math.exp %73 : vector<16x128xf32>
    %cst_27 = arith.constant 1.000000e+00 : f32
    %75 = vector.broadcast %cst_27 : f32 to vector<16x128xf32>
    %76 = arith.addf %75, %74 : vector<16x128xf32>
    %77 = arith.divf %75, %76 : vector<16x128xf32>
    %78 = arith.mulf %71, %51 : vector<16x128xf32>
    %cst_28 = arith.constant 1.000000e+00 : f32
    %79 = vector.broadcast %cst_28 : f32 to vector<16x128xf32>
    %80 = arith.subf %79, %71 : vector<16x128xf32>
    %81 = arith.mulf %80, %65 : vector<16x128xf32>
    %82 = arith.addf %78, %81 : vector<16x128xf32>
    %83 = arith.mulf %77, %82 : vector<16x128xf32>
    %c0_29 = arith.constant 0 : index
    %c0_30 = arith.constant 0 : index
    %84 = vector.load %arg4[%c0_29, %c0_30] : memref<16x128xf32, #tpu.memory_space<vmem>>, vector<16x128xf32>
    %85 = arith.mulf %83, %84 : vector<16x128xf32>
    %86 = vector.shape_cast %85 : vector<16x128xf32> to vector<2x8x128xf32>
    %cst_31 = arith.constant dense<0.000000e+00> : vector<2x8xf32>
    %87 = vector.multi_reduction <add>, %86, %cst_31 [2] : vector<2x8x128xf32> to vector<2x8xf32>
    %88 = vector.shape_cast %87 : vector<2x8xf32> to vector<2x8x1xf32>
    %cst_32 = arith.constant dense<0.000000e+00> : vector<2x1xf32>
    %89 = vector.multi_reduction <add>, %88, %cst_32 [1] : vector<2x8x1xf32> to vector<2x1xf32>
    %90 = vector.shape_cast %89 : vector<2x1xf32> to vector<2x1x1xf32>
    %c0_33 = arith.constant 0 : index
    %c0_34 = arith.constant 0 : index
    %c0_35 = arith.constant 0 : index
    %91 = vector.load %arg5[%c0_33, %c0_34, %c0_35] : memref<2x1x1xf32, #tpu.memory_space<vmem>>, vector<2x1x1xf32>
    %92 = arith.addf %90, %91 : vector<2x1x1xf32>
    %c0_36 = arith.constant 0 : index
    %c0_37 = arith.constant 0 : index
    %c0_38 = arith.constant 0 : index
    %93 = vector.load %arg6[%c0_36, %c0_37, %c0_38] : memref<2x1x1xf32, #tpu.memory_space<vmem>>, vector<2x1x1xf32>
    tpu.vector_store %arg6[%c0_36, %c0_37, %c0_38], %92 {strides = array<i32>} : memref<2x1x1xf32, #tpu.memory_space<vmem>>, vector<2x1x1xf32>,
    return
  }
  func.func @transform_0(%arg0: i32) -> (i32, i32, i32) {
    %c0_i32 = arith.constant 0 : i32
    %c0_i32_0 = arith.constant 0 : i32
    %c0_i32_1 = arith.constant 0 : i32
    return %arg0, %c0_i32, %c0_i32_0 : i32, i32, i32
  }
  func.func @transform_1(%arg0: i32) -> (i32, i32, i32) {
    %c0_i32 = arith.constant 0 : i32
    %c0_i32_0 = arith.constant 0 : i32
    %c0_i32_1 = arith.constant 0 : i32
    %c0_i32_2 = arith.constant 0 : i32
    return %c0_i32, %c0_i32_0, %c0_i32_1 : i32, i32, i32
  }
  func.func @transform_2(%arg0: i32) -> (i32, i32, i32) {
    %c0_i32 = arith.constant 0 : i32
    %c0_i32_0 = arith.constant 0 : i32
    %c0_i32_1 = arith.constant 0 : i32
    %c0_i32_2 = arith.constant 0 : i32
    return %c0_i32, %c0_i32_0, %c0_i32_1 : i32, i32, i32
  }
  func.func @transform_3(%arg0: i32) -> (i32, i32) {
    %c0_i32 = arith.constant 0 : i32
    %c0_i32_0 = arith.constant 0 : i32
    %c0_i32_1 = arith.constant 0 : i32
    return %c0_i32, %c0_i32_0 : i32, i32
  }
  func.func @transform_4(%arg0: i32) -> (i32, i32, i32) {
    %c0_i32 = arith.constant 0 : i32
    %c0_i32_0 = arith.constant 0 : i32
    %c0_i32_1 = arith.constant 0 : i32
    return %arg0, %c0_i32, %c0_i32_0 : i32, i32, i32
  }
  func.func @transform_5(%arg0: i32) -> (i32, i32, i32) {
    %c0_i32 = arith.constant 0 : i32
    %c0_i32_0 = arith.constant 0 : i32
    %c0_i32_1 = arith.constant 0 : i32
    return %arg0, %c0_i32, %c0_i32_0 : i32, i32, i32
  }
}

</mosaic_0001>

<llo_original>
// kernel: tpu_custom_call.1
$region0: #{tpu_custom_call.1}
  #allocation0 [shape = 'u32[]', space=smem, size = 0x4, offset = 0x4, fixed_abs, tag = 'smem constant byte address 0x4 - core index']
  #allocation1 [shape = 'u32[72,128]{1,0:T(1,128)}', space=vmem, size = 0x9000, scoped, tag = 'internal scratch']
  %s0 = inlined_call_operand.hbm [shape: f32[2,8,128], index: 0, kind: input, shape index: {}]
  %s1 = inlined_call_operand.hbm [shape: f32[2,256,384], index: 1, kind: input, shape index: {}]
  %s2 = inlined_call_operand.hbm [shape: f32[2,1,384], index: 2, kind: input, shape index: {}]
  %s3 = inlined_call_operand.hbm [shape: f32[16,128], index: 3, kind: input, shape index: {}]
  %s4 = inlined_call_operand.vmem [shape: f32[2,1,1], index: 4, kind: input, shape index: {}]
  %s5 = inlined_call_operand.vmem [shape: f32[2,1,1], index: 5, kind: output, shape index: {}]
  %s6 = sld [smem:[#allocation0]]
  $region46: #{tpu_custom_call.1} parent=0
    _
  %s8 = ssub.s32 1, %s6
  %s9 = scalar_select 0, %s8, %s6
  $region1: #{tpu_custom_call.1} parent=0
    #allocation2 [shape = 'u8[8192]{0}', space=vmem, size = 0x2000, scoped, tag = 'input window, operand 0, single buffered']
    #allocation3 [shape = 's32[1]{0}', space=sflag, size = 0x4, scoped, tag = 'scoped memory for tpu_custom_call.1']
    #allocation4 [shape = 'u8[786432]{0}', space=vmem, size = 0xc0000, scoped, tag = 'input window, operand 1, single buffered']
    #allocation5 [shape = 's32[1]{0}', space=sflag, size = 0x4, scoped, tag = 'scoped memory for tpu_custom_call.1']
    #allocation6 [shape = 'u8[3072]{0}', space=vmem, size = 0xc00, scoped, tag = 'input window, operand 2, single buffered']
    #allocation7 [shape = 'u8[8192]{0}', space=vmem, size = 0x2000, scoped, tag = 'input window, operand 3, single buffered']
    #allocation8 [shape = 's32[1]{0}', space=sflag, size = 0x4, scoped, tag = 'scoped memory for tpu_custom_call.1']
    %10 = vsyncpa [#allocation3], 0
    %11 = vsyncpa [#allocation5], 0
    %12 = vsyncpa [#allocation8], 0
    // Predicated region
    $region2: #{tpu_custom_call.1} parent=1 // pred_check
      _
    $region3: #{tpu_custom_call.1} parent=1 // pred_check_branch
      %14 = sbr.rel (0) target = $region5
    $region4: #{tpu_custom_call.1} parent=1 // pred_region
      %16 = vsyncadd [#allocation3], 0
      %s17 = sshll.u32 %s0, 4
      %s18 = int_to_ptr.hbm [resolvable:$true] %s17
      %s19 = sshll.u32 [#allocation2], 4
      %s20 = int_to_ptr.vmem [resolvable:$true] %s19
      %25 = dma.hbm_to_vmem [thread:$0]  %s18, 256, %s20, [#allocation3], 128, 128, 8
    $region5: #{tpu_custom_call.1} parent=1 // pred_fallthru
      _
    // Predicated region
    $region6: #{tpu_custom_call.1} parent=1 // pred_check
      _
    $region7: #{tpu_custom_call.1} parent=1 // pred_check_branch
      %27 = sbr.rel (0) target = $region9
    $region8: #{tpu_custom_call.1} parent=1 // pred_region
      %29 = vsyncadd [#allocation5], 0
      %s30 = sshll.u32 %s1, 4
      %s31 = int_to_ptr.hbm [resolvable:$true] %s30
      %s32 = sshll.u32 [#allocation4], 4
      %s33 = int_to_ptr.vmem [resolvable:$true] %s32
      %38 = dma.hbm_to_vmem [thread:$0]  %s31, 24576, %s33, [#allocation5], 384, 384, 24
    $region9: #{tpu_custom_call.1} parent=1 // pred_fallthru
      _
    // Predicated region
    $region10: #{tpu_custom_call.1} parent=1 // pred_check
      _
    $region11: #{tpu_custom_call.1} parent=1 // pred_check_branch
      %40 = sbr.rel (0) target = $region13
    $region12: #{tpu_custom_call.1} parent=1 // pred_region
      %42 = vsyncadd [#allocation5], 0
      %s43 = sshll.u32 %s2, 4
      %s44 = int_to_ptr.hbm [resolvable:$true] %s43
      %s45 = sshll.u32 [#allocation6], 4
      %s46 = int_to_ptr.vmem [resolvable:$true] %s45
      %51 = dma.hbm_to_vmem [thread:$0]  %s44, 96, %s46, [#allocation5], 48, 48, 3
    $region13: #{tpu_custom_call.1} parent=1 // pred_fallthru
      _
    // Predicated region
    $region14: #{tpu_custom_call.1} parent=1 // pred_check
      _
    $region15: #{tpu_custom_call.1} parent=1 // pred_check_branch
      %53 = sbr.rel (0) target = $region17
    $region16: #{tpu_custom_call.1} parent=1 // pred_region
      %55 = vsyncadd [#allocation8], 0
      %s56 = sshll.u32 %s3, 4
      %s57 = int_to_ptr.hbm [resolvable:$true] %s56
      %s58 = sshll.u32 [#allocation7], 4
      %s59 = int_to_ptr.vmem [resolvable:$true] %s58
      %64 = dma.hbm_to_vmem [thread:$0]  %s57, 256, %s59, [#allocation8], 128, 128, 8
    $region17: #{tpu_custom_call.1} parent=1 // pred_fallthru
      _
    // Predicated region
    $region18: #{tpu_custom_call.1} parent=1 // pred_check
      _
    $region19: #{tpu_custom_call.1} parent=1 // pred_check_branch
      %66 = sbr.rel (0) target = $region21
    $region20: #{tpu_custom_call.1} parent=1 // pred_region
      _
    $region21: #{tpu_custom_call.1} parent=1 // pred_fallthru
      _
    // Predicated region
    $region22: #{tpu_custom_call.1} parent=1 // pred_check
      _
    $region23: #{tpu_custom_call.1} parent=1 // pred_check_branch
      %68 = sbr.rel (0) target = $region25
    $region24: #{tpu_custom_call.1} parent=1 // pred_region
      %70 = dma.done [#allocation3], 256
    $region25: #{tpu_custom_call.1} parent=1 // pred_fallthru
      _
    // Predicated region
    $region26: #{tpu_custom_call.1} parent=1 // pred_check
      _
    $region27: #{tpu_custom_call.1} parent=1 // pred_check_branch
      %72 = sbr.rel (0) target = $region29
    $region28: #{tpu_custom_call.1} parent=1 // pred_region
      %74 = dma.done [#allocation5], 24576
    $region29: #{tpu_custom_call.1} parent=1 // pred_fallthru
      _
    // Predicated region
    $region30: #{tpu_custom_call.1} parent=1 // pred_check
      _
    $region31: #{tpu_custom_call.1} parent=1 // pred_check_branch
      %76 = sbr.rel (0) target = $region33
    $region32: #{tpu_custom_call.1} parent=1 // pred_region
      %78 = dma.done [#allocation5], 96
    $region33: #{tpu_custom_call.1} parent=1 // pred_fallthru
      _
    // Predicated region
    $region34: #{tpu_custom_call.1} parent=1 // pred_check
      _
    $region35: #{tpu_custom_call.1} parent=1 // pred_check_branch
      %80 = sbr.rel (0) target = $region37
    $region36: #{tpu_custom_call.1} parent=1 // pred_region
      %82 = dma.done [#allocation8], 256
    $region37: #{tpu_custom_call.1} parent=1 // pred_fallthru
      _
    %v83 = vld [vmem:[#allocation2] sm:$0xff]
    %v84 = vld [vmem:[#allocation2 + $0x8] sm:$0xff]
    %v85 = vlaneseq
    %v86 = vshrl.u32 %v85, 7
    %v87 = vadd.s32 %v86, 8
    %vm88 = vcmp.lt.s32.totalorder %v86, 0
    %v89 = vsub.s32 0, %v86
    %v90 = vsel %vm88, %v89, %v86
    %v91 = vshrl.u32 %v90, 3
    %v92 = vand.u32 %v90, 7
    %v93 = vsub.s32 0, %v92
    %v94 = vsel %vm88, %v93, %v92
    %vm95 = vcmp.lt.s32.totalorder %v87, 0
    %v96 = vsub.s32 0, %v87
    %v97 = vsel %vm95, %v96, %v87
    %v98 = vshrl.u32 %v97, 3
    %v99 = vand.u32 %v97, 7
    %v100 = vsub.s32 0, %v99
    %v101 = vsel %vm95, %v100, %v99
    %vm102 = vcmp.ne.s32.totalorder %v94, 0
    %vm103 = vcmp.ne.s32.totalorder %v101, 0
    %vm104 = vcmp.lt.s32.totalorder %v94, 0
    %vm105 = vcmp.lt.s32.totalorder %v101, 0
    %vm106 = vmand %vm104, %vm102
    %vm107 = vmand %vm105, %vm103
    %v108 = vadd.s32 %v94, 8
    %v109 = vadd.s32 %v101, 8
    %v110 = vsel %vm106, %v108, %v94
    %v111 = vsel %vm107, %v109, %v101
    %vm112 = vcmp.eq.s32.totalorder %v110, 0
    %vm113 = vcmp.eq.s32.totalorder %v111, 0
    %v114 = vrot.slane %v83, 7
    %v115 = vrot.slane %v84, 7
    %vm116 = vcmp.lt.s32.totalorder %v86, 1
    %v117 = vsel %vm116, %v114, %v115
    %v118 = vsel %vm116, %v115, %v114
    %v119 = vsel %vm112, 0.0, %v118
    %v120 = vsel %vm113, 0.0, %v117
    %v121 = vld [vmem:[#allocation4] sm:$0xff]
    %v122 = vld [vmem:[#allocation4 + $0x8] sm:$0xff]
    %v123 = vld [vmem:[#allocation4 + $0x10] sm:$0xff]
    %v124 = vld [vmem:[#allocation4 + $0x18] sm:$0xff]
    %v125 = vld [vmem:[#allocation4 + $0x20] sm:$0xff]
    %v126 = vld [vmem:[#allocation4 + $0x28] sm:$0xff]
    %v127 = vld [vmem:[#allocation4 + $0x30] sm:$0xff]
    %v128 = vld [vmem:[#allocation4 + $0x38] sm:$0xff]
    %v129 = vld [vmem:[#allocation4 + $0x40] sm:$0xff]
    %v130 = vld [vmem:[#allocation4 + $0x48] sm:$0xff]
    %v131 = vld [vmem:[#allocation4 + $0x50] sm:$0xff]
    %v132 = vld [vmem:[#allocation4 + $0x58] sm:$0xff]
    %v133 = vld [vmem:[#allocation4 + $0x60] sm:$0xff]
    %v134 = vld [vmem:[#allocation4 + $0x68] sm:$0xff]
    %v135 = vld [vmem:[#allocation4 + $0x70] sm:$0xff]
    %v136 = vld [vmem:[#allocation4 + $0x78] sm:$0xff]
    %v137 = vld [vmem:[#allocation4 + $0x80] sm:$0xff]
    %v138 = vld [vmem:[#allocation4 + $0x88] sm:$0xff]
    %v139 = vld [vmem:[#allocation4 + $0x90] sm:$0xff]
    %v140 = vld [vmem:[#allocation4 + $0x98] sm:$0xff]
    %v141 = vld [vmem:[#allocation4 + $0xa0] sm:$0xff]
    %v142 = vld [vmem:[#allocation4 + $0xa8] sm:$0xff]
    %v143 = vld [vmem:[#allocation4 + $0xb0] sm:$0xff]
    %v144 = vld [vmem:[#allocation4 + $0xb8] sm:$0xff]
    %v145 = vld [vmem:[#allocation4 + $0xc0] sm:$0xff]
    %v146 = vld [vmem:[#allocation4 + $0xc8] sm:$0xff]
    %v147 = vld [vmem:[#allocation4 + $0xd0] sm:$0xff]
    %v148 = vld [vmem:[#allocation4 + $0xd8] sm:$0xff]
    %v149 = vld [vmem:[#allocation4 + $0xe0] sm:$0xff]
    %v150 = vld [vmem:[#allocation4 + $0xe8] sm:$0xff]
    %v151 = vld [vmem:[#allocation4 + $0xf0] sm:$0xff]
    %v152 = vld [vmem:[#allocation4 + $0xf8] sm:$0xff]
    %v153 = vld [vmem:[#allocation4 + $0x100] sm:$0xff]
    %v154 = vld [vmem:[#allocation4 + $0x108] sm:$0xff]
    %v155 = vld [vmem:[#allocation4 + $0x110] sm:$0xff]
    %v156 = vld [vmem:[#allocation4 + $0x118] sm:$0xff]
    %v157 = vld [vmem:[#allocation4 + $0x120] sm:$0xff]
    %v158 = vld [vmem:[#allocation4 + $0x128] sm:$0xff]
    %v159 = vld [vmem:[#allocation4 + $0x130] sm:$0xff]
    %v160 = vld [vmem:[#allocation4 + $0x138] sm:$0xff]
    %v161 = vld [vmem:[#allocation4 + $0x140] sm:$0xff]
    %v162 = vld [vmem:[#allocation4 + $0x148] sm:$0xff]
    %v163 = vld [vmem:[#allocation4 + $0x150] sm:$0xff]
    %v164 = vld [vmem:[#allocation4 + $0x158] sm:$0xff]
    %v165 = vld [vmem:[#allocation4 + $0x160] sm:$0xff]
    %v166 = vld [vmem:[#allocation4 + $0x168] sm:$0xff]
    %v167 = vld [vmem:[#allocation4 + $0x170] sm:$0xff]
    %v168 = vld [vmem:[#allocation4 + $0x178] sm:$0xff]
    %v169 = vld [vmem:[#allocation4 + $0x180] sm:$0xff]
    %v170 = vld [vmem:[#allocation4 + $0x188] sm:$0xff]
    %v171 = vld [vmem:[#allocation4 + $0x190] sm:$0xff]
    %v172 = vld [vmem:[#allocation4 + $0x198] sm:$0xff]
    %v173 = vld [vmem:[#allocation4 + $0x1a0] sm:$0xff]
    %v174 = vld [vmem:[#allocation4 + $0x1a8] sm:$0xff]
    %v175 = vld [vmem:[#allocation4 + $0x1b0] sm:$0xff]
    %v176 = vld [vmem:[#allocation4 + $0x1b8] sm:$0xff]
    %v177 = vld [vmem:[#allocation4 + $0x1c0] sm:$0xff]
    %v178 = vld [vmem:[#allocation4 + $0x1c8] sm:$0xff]
    %v179 = vld [vmem:[#allocation4 + $0x1d0] sm:$0xff]
    %v180 = vld [vmem:[#allocation4 + $0x1d8] sm:$0xff]
    %v181 = vld [vmem:[#allocation4 + $0x1e0] sm:$0xff]
    %v182 = vld [vmem:[#allocation4 + $0x1e8] sm:$0xff]
    %v183 = vld [vmem:[#allocation4 + $0x1f0] sm:$0xff]
    %v184 = vld [vmem:[#allocation4 + $0x1f8] sm:$0xff]
    %v185 = vld [vmem:[#allocation4 + $0x200] sm:$0xff]
    %v186 = vld [vmem:[#allocation4 + $0x208] sm:$0xff]
    %v187 = vld [vmem:[#allocation4 + $0x210] sm:$0xff]
    %v188 = vld [vmem:[#allocation4 + $0x218] sm:$0xff]
    %v189 = vld [vmem:[#allocation4 + $0x220] sm:$0xff]
    %v190 = vld [vmem:[#allocation4 + $0x228] sm:$0xff]
    %v191 = vld [vmem:[#allocation4 + $0x230] sm:$0xff]
    %v192 = vld [vmem:[#allocation4 + $0x238] sm:$0xff]
    %v193 = vld [vmem:[#allocation4 + $0x240] sm:$0xff]
    %v194 = vld [vmem:[#allocation4 + $0x248] sm:$0xff]
    %v195 = vld [vmem:[#allocation4 + $0x250] sm:$0xff]
    %v196 = vld [vmem:[#allocation4 + $0x258] sm:$0xff]
    %v197 = vld [vmem:[#allocation4 + $0x260] sm:$0xff]
    %v198 = vld [vmem:[#allocation4 + $0x268] sm:$0xff]
    %v199 = vld [vmem:[#allocation4 + $0x270] sm:$0xff]
    %v200 = vld [vmem:[#allocation4 + $0x278] sm:$0xff]
    %v201 = vld [vmem:[#allocation4 + $0x280] sm:$0xff]
    %v202 = vld [vmem:[#allocation4 + $0x288] sm:$0xff]
    %v203 = vld [vmem:[#allocation4 + $0x290] sm:$0xff]
    %v204 = vld [vmem:[#allocation4 + $0x298] sm:$0xff]
    %v205 = vld [vmem:[#allocation4 + $0x2a0] sm:$0xff]
    %v206 = vld [vmem:[#allocation4 + $0x2a8] sm:$0xff]
    %v207 = vld [vmem:[#allocation4 + $0x2b0] sm:$0xff]
    %v208 = vld [vmem:[#allocation4 + $0x2b8] sm:$0xff]
    %v209 = vld [vmem:[#allocation4 + $0x2c0] sm:$0xff]
    %v210 = vld [vmem:[#allocation4 + $0x2c8] sm:$0xff]
    %v211 = vld [vmem:[#allocation4 + $0x2d0] sm:$0xff]
    %v212 = vld [vmem:[#allocation4 + $0x2d8] sm:$0xff]
    %v213 = vld [vmem:[#allocation4 + $0x2e0] sm:$0xff]
    %v214 = vld [vmem:[#allocation4 + $0x2e8] sm:$0xff]
    %v215 = vld [vmem:[#allocation4 + $0x2f0] sm:$0xff]
    %v216 = vld [vmem:[#allocation4 + $0x2f8] sm:$0xff]
    %v217 = vld [vmem:[#allocation6] sm:$0x7]
    %v219 = vperm.slane %v217, 0
    %v220 = vperm.slane %v217, 1
    %v221 = vperm.slane %v217, 2
    %225 = vmatpush.msra.mxu0 %v166
    %226 = vmatpush.msra.mxu0 %v163
    %227 = vmatpush.msra.mxu0 %v160
    %228 = vmatpush.msra.mxu0 %v157
    %229 = vmatpush.msra.mxu0 %v154
    %230 = vmatpush.msra.mxu0 %v151
    %231 = vmatpush.msra.mxu0 %v148
    %232 = vmatpush.msra.mxu0 %v145
    %233 = vmatpush.msra.mxu0 %v142
    %234 = vmatpush.msra.mxu0 %v139
    %235 = vmatpush.msra.mxu0 %v136
    %236 = vmatpush.msra.mxu0 %v133
    %237 = vmatpush.msra.mxu0 %v130
    %238 = vmatpush.msra.mxu0 %v127
    %239 = vmatpush.msra.mxu0 %v124
    %240 = vmatpush.msra.mxu0 %v121
    %241 = vmatmul.f32.gmra.mxu0 %v119
    %v242 = vpop.f32.mrf.mxu0
    %v243 = vadd.f32 %v219, %v242
    %244 = vmatmul.f32.gmra.mxu0 %v120
    %v245 = vpop.f32.mrf.mxu0
    %v246 = vadd.f32 %v219, %v245
    %247 = vdwg.mxu0
    %248 = vmatpush.msra.mxu0 %v214
    %249 = vmatpush.msra.mxu0 %v211
    %250 = vmatpush.msra.mxu0 %v208
    %251 = vmatpush.msra.mxu0 %v205
    %252 = vmatpush.msra.mxu0 %v202
    %253 = vmatpush.msra.mxu0 %v199
    %254 = vmatpush.msra.mxu0 %v196
    %255 = vmatpush.msra.mxu0 %v193
    %256 = vmatpush.msra.mxu0 %v190
    %257 = vmatpush.msra.mxu0 %v187
    %258 = vmatpush.msra.mxu0 %v184
    %259 = vmatpush.msra.mxu0 %v181
    %260 = vmatpush.msra.mxu0 %v178
    %261 = vmatpush.msra.mxu0 %v175
    %262 = vmatpush.msra.mxu0 %v172
    %263 = vmatpush.msra.mxu0 %v169
    %264 = vmatmul.f32.gmra.mxu0 %v83
    %v265 = vpop.f32.mrf.mxu0
    %v266 = vadd.f32 %v243, %v265
    %267 = vmatmul.f32.gmra.mxu0 %v84
    %v268 = vpop.f32.mrf.mxu0
    %v269 = vadd.f32 %v246, %v268
    %270 = vdwg.mxu0
    %271 = vmatpush.msra.mxu0 %v167
    %272 = vmatpush.msra.mxu0 %v164
    %273 = vmatpush.msra.mxu0 %v161
    %274 = vmatpush.msra.mxu0 %v158
    %275 = vmatpush.msra.mxu0 %v155
    %276 = vmatpush.msra.mxu0 %v152
    %277 = vmatpush.msra.mxu0 %v149
    %278 = vmatpush.msra.mxu0 %v146
    %279 = vmatpush.msra.mxu0 %v143
    %280 = vmatpush.msra.mxu0 %v140
    %281 = vmatpush.msra.mxu0 %v137
    %282 = vmatpush.msra.mxu0 %v134
    %283 = vmatpush.msra.mxu0 %v131
    %284 = vmatpush.msra.mxu0 %v128
    %285 = vmatpush.msra.mxu0 %v125
    %286 = vmatpush.msra.mxu0 %v122
    %287 = vmatmul.f32.gmra.mxu0 %v119
    %v288 = vpop.f32.mrf.mxu0
    %v289 = vadd.f32 %v220, %v288
    %290 = vmatmul.f32.gmra.mxu0 %v120
    %v291 = vpop.f32.mrf.mxu0
    %v292 = vadd.f32 %v220, %v291
    %293 = vdwg.mxu0
    %294 = vmatpush.msra.mxu0 %v215
    %295 = vmatpush.msra.mxu0 %v212
    %296 = vmatpush.msra.mxu0 %v209
    %297 = vmatpush.msra.mxu0 %v206
    %298 = vmatpush.msra.mxu0 %v203
    %299 = vmatpush.msra.mxu0 %v200
    %300 = vmatpush.msra.mxu0 %v197
    %301 = vmatpush.msra.mxu0 %v194
    %302 = vmatpush.msra.mxu0 %v191
    %303 = vmatpush.msra.mxu0 %v188
    %304 = vmatpush.msra.mxu0 %v185
    %305 = vmatpush.msra.mxu0 %v182
    %306 = vmatpush.msra.mxu0 %v179
    %307 = vmatpush.msra.mxu0 %v176
    %308 = vmatpush.msra.mxu0 %v173
    %309 = vmatpush.msra.mxu0 %v170
    %310 = vmatmul.f32.gmra.mxu0 %v83
    %v311 = vpop.f32.mrf.mxu0
    %v312 = vadd.f32 %v289, %v311
    %313 = vmatmul.f32.gmra.mxu0 %v84
    %v314 = vpop.f32.mrf.mxu0
    %v315 = vadd.f32 %v292, %v314
    %316 = vdwg.mxu0
    %317 = vmatpush.msra.mxu0 %v168
    %318 = vmatpush.msra.mxu0 %v165
    %319 = vmatpush.msra.mxu0 %v162
    %320 = vmatpush.msra.mxu0 %v159
    %321 = vmatpush.msra.mxu0 %v156
    %322 = vmatpush.msra.mxu0 %v153
    %323 = vmatpush.msra.mxu0 %v150
    %324 = vmatpush.msra.mxu0 %v147
    %325 = vmatpush.msra.mxu0 %v144
    %326 = vmatpush.msra.mxu0 %v141
    %327 = vmatpush.msra.mxu0 %v138
    %328 = vmatpush.msra.mxu0 %v135
    %329 = vmatpush.msra.mxu0 %v132
    %330 = vmatpush.msra.mxu0 %v129
    %331 = vmatpush.msra.mxu0 %v126
    %332 = vmatpush.msra.mxu0 %v123
    %333 = vmatmul.f32.gmra.mxu0 %v119
    %v334 = vpop.f32.mrf.mxu0
    %v335 = vadd.f32 %v221, %v334
    %336 = vmatmul.f32.gmra.mxu0 %v120
    %v337 = vpop.f32.mrf.mxu0
    %v338 = vadd.f32 %v221, %v337
    %339 = vdwg.mxu0
    %340 = vmatpush.msra.mxu0 %v216
    %341 = vmatpush.msra.mxu0 %v213
    %342 = vmatpush.msra.mxu0 %v210
    %343 = vmatpush.msra.mxu0 %v207
    %344 = vmatpush.msra.mxu0 %v204
    %345 = vmatpush.msra.mxu0 %v201
    %346 = vmatpush.msra.mxu0 %v198
    %347 = vmatpush.msra.mxu0 %v195
    %348 = vmatpush.msra.mxu0 %v192
    %349 = vmatpush.msra.mxu0 %v189
    %350 = vmatpush.msra.mxu0 %v186
    %351 = vmatpush.msra.mxu0 %v183
    %352 = vmatpush.msra.mxu0 %v180
    %353 = vmatpush.msra.mxu0 %v177
    %354 = vmatpush.msra.mxu0 %v174
    %355 = vmatpush.msra.mxu0 %v171
    %356 = vmatmul.f32.gmra.mxu0 %v83
    %v357 = vpop.f32.mrf.mxu0
    %v358 = vadd.f32 %v335, %v357
    %359 = vmatmul.f32.gmra.mxu0 %v84
    %v360 = vpop.f32.mrf.mxu0
    %v361 = vadd.f32 %v338, %v360
    %362 = vdwg.mxu0
    %v363 = vtanh.pop %v266
    %v364 = vtanh.pop %v269
    %v365 = vxor.u32 %v312, 2147483648
    %v366 = vxor.u32 %v315, 2147483648
    %v367 = vmul.f32 %v365, 1.442695
    %v368 = vpow.pop %v367
    %v369 = vmul.f32 %v366, 1.442695
    %v370 = vpow.pop %v369
    %v371 = vadd.f32 %v368, 1.0
    %v372 = vadd.f32 %v370, 1.0
    %v373 = vrcp.pop %v371
    %v374 = vmul.f32 %v371, %v373
    %v375 = vsub.f32 1.0, %v374
    %v376 = vmul.f32 %v373, %v375
    %v377 = vadd.f32 %v373, %v376
    %vm378 = vweird.f32 %v371
    %vm379 = vweird.f32 %v373
    %vm380 = vmor %vm378, %vm379
    %v381 = vsel %vm380, %v373, %v377
    %v382 = vand.u32 2147483647, %v371
    %vm383 = vcmp.eq.f32.partialorder %v382, 8.507059e+37
    %v384 = vand.u32 %v371, 2147483648
    %v385 = vor.u32 1.1754944e-38, %v384
    %v386 = vsel %vm383, %v385, %v381
    %v387 = vmul.f32 1.0, %v386
    %v388 = vrcp.pop %v372
    %v389 = vmul.f32 %v372, %v388
    %v390 = vsub.f32 1.0, %v389
    %v391 = vmul.f32 %v388, %v390
    %v392 = vadd.f32 %v388, %v391
    %vm393 = vweird.f32 %v372
    %vm394 = vweird.f32 %v388
    %vm395 = vmor %vm393, %vm394
    %v396 = vsel %vm395, %v388, %v392
    %v397 = vand.u32 2147483647, %v372
    %vm398 = vcmp.eq.f32.partialorder %v397, 8.507059e+37
    %v399 = vand.u32 %v372, 2147483648
    %v400 = vor.u32 1.1754944e-38, %v399
    %v401 = vsel %vm398, %v400, %v396
    %v402 = vmul.f32 1.0, %v401
    %v403 = vxor.u32 %v358, 2147483648
    %v404 = vxor.u32 %v361, 2147483648
    %v405 = vmul.f32 %v403, 1.442695
    %v406 = vpow.pop %v405
    %v407 = vmul.f32 %v404, 1.442695
    %v408 = vpow.pop %v407
    %v409 = vadd.f32 %v406, 1.0
    %v410 = vadd.f32 %v408, 1.0
    %v411 = vrcp.pop %v409
    %v412 = vmul.f32 %v409, %v411
    %v413 = vsub.f32 1.0, %v412
    %v414 = vmul.f32 %v411, %v413
    %v415 = vadd.f32 %v411, %v414
    %vm416 = vweird.f32 %v409
    %vm417 = vweird.f32 %v411
    %vm418 = vmor %vm416, %vm417
    %v419 = vsel %vm418, %v411, %v415
    %v420 = vand.u32 2147483647, %v409
    %vm421 = vcmp.eq.f32.partialorder %v420, 8.507059e+37
    %v422 = vand.u32 %v409, 2147483648
    %v423 = vor.u32 1.1754944e-38, %v422
    %v424 = vsel %vm421, %v423, %v419
    %v425 = vmul.f32 1.0, %v424
    %v426 = vrcp.pop %v410
    %v427 = vmul.f32 %v410, %v426
    %v428 = vsub.f32 1.0, %v427
    %v429 = vmul.f32 %v426, %v428
    %v430 = vadd.f32 %v426, %v429
    %vm431 = vweird.f32 %v410
    %vm432 = vweird.f32 %v426
    %vm433 = vmor %vm431, %vm432
    %v434 = vsel %vm433, %v426, %v430
    %v435 = vand.u32 2147483647, %v410
    %vm436 = vcmp.eq.f32.partialorder %v435, 8.507059e+37
    %v437 = vand.u32 %v410, 2147483648
    %v438 = vor.u32 1.1754944e-38, %v437
    %v439 = vsel %vm436, %v438, %v434
    %v440 = vmul.f32 1.0, %v439
    %v441 = vmul.f32 %v387, 0.0
    %v442 = vmul.f32 %v402, 0.0
    %v443 = vsub.f32 1.0, %v387
    %v444 = vsub.f32 1.0, %v402
    %v445 = vmul.f32 %v443, %v363
    %v446 = vmul.f32 %v444, %v364
    %v447 = vadd.f32 %v441, %v445
    %v448 = vadd.f32 %v442, %v446
    %v449 = vmul.f32 %v425, %v447
    %v450 = vmul.f32 %v440, %v448
    %v451 = vrot.slane %v449, 7
    %v452 = vrot.slane %v450, 7
    %v453 = vsel %vm116, %v451, %v452
    %v454 = vsel %vm116, %v452, %v451
    %v455 = vsel %vm112, 0.0, %v454
    %v456 = vsel %vm113, 0.0, %v453
    %s457 = scalar_lea.vmem [#allocation4], 768
    %v458 = vld [vmem:[%s457] sm:$0xff]
    %v459 = vld [vmem:[%s457 + $0x8] sm:$0xff]
    %v460 = vld [vmem:[%s457 + $0x10] sm:$0xff]
    %v461 = vld [vmem:[%s457 + $0x18] sm:$0xff]
    %v462 = vld [vmem:[%s457 + $0x20] sm:$0xff]
    %v463 = vld [vmem:[%s457 + $0x28] sm:$0xff]
    %v464 = vld [vmem:[%s457 + $0x30] sm:$0xff]
    %v465 = vld [vmem:[%s457 + $0x38] sm:$0xff]
    %v466 = vld [vmem:[%s457 + $0x40] sm:$0xff]
    %v467 = vld [vmem:[%s457 + $0x48] sm:$0xff]
    %v468 = vld [vmem:[%s457 + $0x50] sm:$0xff]
    %v469 = vld [vmem:[%s457 + $0x58] sm:$0xff]
    %v470 = vld [vmem:[%s457 + $0x60] sm:$0xff]
    %v471 = vld [vmem:[%s457 + $0x68] sm:$0xff]
    %v472 = vld [vmem:[%s457 + $0x70] sm:$0xff]
    %v473 = vld [vmem:[%s457 + $0x78] sm:$0xff]
    %v474 = vld [vmem:[%s457 + $0x80] sm:$0xff]
    %v475 = vld [vmem:[%s457 + $0x88] sm:$0xff]
    %v476 = vld [vmem:[%s457 + $0x90] sm:$0xff]
    %v477 = vld [vmem:[%s457 + $0x98] sm:$0xff]
    %v478 = vld [vmem:[%s457 + $0xa0] sm:$0xff]
    %v479 = vld [vmem:[%s457 + $0xa8] sm:$0xff]
    %v480 = vld [vmem:[%s457 + $0xb0] sm:$0xff]
    %v481 = vld [vmem:[%s457 + $0xb8] sm:$0xff]
    %v482 = vld [vmem:[%s457 + $0xc0] sm:$0xff]
    %v483 = vld [vmem:[%s457 + $0xc8] sm:$0xff]
    %v484 = vld [vmem:[%s457 + $0xd0] sm:$0xff]
    %v485 = vld [vmem:[%s457 + $0xd8] sm:$0xff]
    %v486 = vld [vmem:[%s457 + $0xe0] sm:$0xff]
    %v487 = vld [vmem:[%s457 + $0xe8] sm:$0xff]
    %v488 = vld [vmem:[%s457 + $0xf0] sm:$0xff]
    %v489 = vld [vmem:[%s457 + $0xf8] sm:$0xff]
    %v490 = vld [vmem:[%s457 + $0x100] sm:$0xff]
    %v491 = vld [vmem:[%s457 + $0x108] sm:$0xff]
    %v492 = vld [vmem:[%s457 + $0x110] sm:$0xff]
    %v493 = vld [vmem:[%s457 + $0x118] sm:$0xff]
    %v494 = vld [vmem:[%s457 + $0x120] sm:$0xff]
    %v495 = vld [vmem:[%s457 + $0x128] sm:$0xff]
    %v496 = vld [vmem:[%s457 + $0x130] sm:$0xff]
    %v497 = vld [vmem:[%s457 + $0x138] sm:$0xff]
    %v498 = vld [vmem:[%s457 + $0x140] sm:$0xff]
    %v499 = vld [vmem:[%s457 + $0x148] sm:$0xff]
    %v500 = vld [vmem:[%s457 + $0x150] sm:$0xff]
    %v501 = vld [vmem:[%s457 + $0x158] sm:$0xff]
    %v502 = vld [vmem:[%s457 + $0x160] sm:$0xff]
    %v503 = vld [vmem:[%s457 + $0x168] sm:$0xff]
    %v504 = vld [vmem:[%s457 + $0x170] sm:$0xff]
    %v505 = vld [vmem:[%s457 + $0x178] sm:$0xff]
    %v506 = vld [vmem:[%s457 + $0x180] sm:$0xff]
    %v507 = vld [vmem:[%s457 + $0x188] sm:$0xff]
    %v508 = vld [vmem:[%s457 + $0x190] sm:$0xff]
    %v509 = vld [vmem:[%s457 + $0x198] sm:$0xff]
    %v510 = vld [vmem:[%s457 + $0x1a0] sm:$0xff]
    %v511 = vld [vmem:[%s457 + $0x1a8] sm:$0xff]
    %v512 = vld [vmem:[%s457 + $0x1b0] sm:$0xff]
    %v513 = vld [vmem:[%s457 + $0x1b8] sm:$0xff]
    %v514 = vld [vmem:[%s457 + $0x1c0] sm:$0xff]
    %v515 = vld [vmem:[%s457 + $0x1c8] sm:$0xff]
    %v516 = vld [vmem:[%s457 + $0x1d0] sm:$0xff]
    %v517 = vld [vmem:[%s457 + $0x1d8] sm:$0xff]
    %v518 = vld [vmem:[%s457 + $0x1e0] sm:$0xff]
    %v519 = vld [vmem:[%s457 + $0x1e8] sm:$0xff]
    %v520 = vld [vmem:[%s457 + $0x1f0] sm:$0xff]
    %v521 = vld [vmem:[%s457 + $0x1f8] sm:$0xff]
    %v522 = vld [vmem:[%s457 + $0x200] sm:$0xff]
    %v523 = vld [vmem:[%s457 + $0x208] sm:$0xff]
    %v524 = vld [vmem:[%s457 + $0x210] sm:$0xff]
    %v525 = vld [vmem:[%s457 + $0x218] sm:$0xff]
    %v526 = vld [vmem:[%s457 + $0x220] sm:$0xff]
    %v527 = vld [vmem:[%s457 + $0x228] sm:$0xff]
    %v528 = vld [vmem:[%s457 + $0x230] sm:$0xff]
    %v529 = vld [vmem:[%s457 + $0x238] sm:$0xff]
    %v530 = vld [vmem:[%s457 + $0x240] sm:$0xff]
    %v531 = vld [vmem:[%s457 + $0x248] sm:$0xff]
    %v532 = vld [vmem:[%s457 + $0x250] sm:$0xff]
    %v533 = vld [vmem:[%s457 + $0x258] sm:$0xff]
    %v534 = vld [vmem:[%s457 + $0x260] sm:$0xff]
    %v535 = vld [vmem:[%s457 + $0x268] sm:$0xff]
    %v536 = vld [vmem:[%s457 + $0x270] sm:$0xff]
    %v537 = vld [vmem:[%s457 + $0x278] sm:$0xff]
    %v538 = vld [vmem:[%s457 + $0x280] sm:$0xff]
    %v539 = vld [vmem:[%s457 + $0x288] sm:$0xff]
    %v540 = vld [vmem:[%s457 + $0x290] sm:$0xff]
    %v541 = vld [vmem:[%s457 + $0x298] sm:$0xff]
    %v542 = vld [vmem:[%s457 + $0x2a0] sm:$0xff]
    %v543 = vld [vmem:[%s457 + $0x2a8] sm:$0xff]
    %v544 = vld [vmem:[%s457 + $0x2b0] sm:$0xff]
    %v545 = vld [vmem:[%s457 + $0x2b8] sm:$0xff]
    %v546 = vld [vmem:[%s457 + $0x2c0] sm:$0xff]
    %v547 = vld [vmem:[%s457 + $0x2c8] sm:$0xff]
    %v548 = vld [vmem:[%s457 + $0x2d0] sm:$0xff]
    %v549 = vld [vmem:[%s457 + $0x2d8] sm:$0xff]
    %v550 = vld [vmem:[%s457 + $0x2e0] sm:$0xff]
    %v551 = vld [vmem:[%s457 + $0x2e8] sm:$0xff]
    %v552 = vld [vmem:[%s457 + $0x2f0] sm:$0xff]
    %v553 = vld [vmem:[%s457 + $0x2f8] sm:$0xff]
    %s554 = scalar_lea.vmem [#allocation6], 3
    %v555 = vld [vmem:[%s554] sm:$0x7]
    %v557 = vperm.slane %v555, 0
    %v558 = vperm.slane %v555, 1
    %v559 = vperm.slane %v555, 2
    %563 = vmatpush.msra.mxu0 %v503
    %564 = vmatpush.msra.mxu0 %v500
    %565 = vmatpush.msra.mxu0 %v497
    %566 = vmatpush.msra.mxu0 %v494
    %567 = vmatpush.msra.mxu0 %v491
    %568 = vmatpush.msra.mxu0 %v488
    %569 = vmatpush.msra.mxu0 %v485
    %570 = vmatpush.msra.mxu0 %v482
    %571 = vmatpush.msra.mxu0 %v479
    %572 = vmatpush.msra.mxu0 %v476
    %573 = vmatpush.msra.mxu0 %v473
    %574 = vmatpush.msra.mxu0 %v470
    %575 = vmatpush.msra.mxu0 %v467
    %576 = vmatpush.msra.mxu0 %v464
    %577 = vmatpush.msra.mxu0 %v461
    %578 = vmatpush.msra.mxu0 %v458
    %579 = vmatmul.f32.gmra.mxu0 %v455
    %v580 = vpop.f32.mrf.mxu0
    %v581 = vadd.f32 %v557, %v580
    %582 = vmatmul.f32.gmra.mxu0 %v456
    %v583 = vpop.f32.mrf.mxu0
    %v584 = vadd.f32 %v557, %v583
    %585 = vdwg.mxu0
    %586 = vmatpush.msra.mxu0 %v551
    %587 = vmatpush.msra.mxu0 %v548
    %588 = vmatpush.msra.mxu0 %v545
    %589 = vmatpush.msra.mxu0 %v542
    %590 = vmatpush.msra.mxu0 %v539
    %591 = vmatpush.msra.mxu0 %v536
    %592 = vmatpush.msra.mxu0 %v533
    %593 = vmatpush.msra.mxu0 %v530
    %594 = vmatpush.msra.mxu0 %v527
    %595 = vmatpush.msra.mxu0 %v524
    %596 = vmatpush.msra.mxu0 %v521
    %597 = vmatpush.msra.mxu0 %v518
    %598 = vmatpush.msra.mxu0 %v515
    %599 = vmatpush.msra.mxu0 %v512
    %600 = vmatpush.msra.mxu0 %v509
    %601 = vmatpush.msra.mxu0 %v506
    %602 = vmatmul.f32.gmra.mxu0 %v449
    %v603 = vpop.f32.mrf.mxu0
    %v604 = vadd.f32 %v581, %v603
    %605 = vmatmul.f32.gmra.mxu0 %v450
    %v606 = vpop.f32.mrf.mxu0
    %v607 = vadd.f32 %v584, %v606
    %608 = vdwg.mxu0
    %609 = vmatpush.msra.mxu0 %v504
    %610 = vmatpush.msra.mxu0 %v501
    %611 = vmatpush.msra.mxu0 %v498
    %612 = vmatpush.msra.mxu0 %v495
    %613 = vmatpush.msra.mxu0 %v492
    %614 = vmatpush.msra.mxu0 %v489
    %615 = vmatpush.msra.mxu0 %v486
    %616 = vmatpush.msra.mxu0 %v483
    %617 = vmatpush.msra.mxu0 %v480
    %618 = vmatpush.msra.mxu0 %v477
    %619 = vmatpush.msra.mxu0 %v474
    %620 = vmatpush.msra.mxu0 %v471
    %621 = vmatpush.msra.mxu0 %v468
    %622 = vmatpush.msra.mxu0 %v465
    %623 = vmatpush.msra.mxu0 %v462
    %624 = vmatpush.msra.mxu0 %v459
    %625 = vmatmul.f32.gmra.mxu0 %v455
    %v626 = vpop.f32.mrf.mxu0
    %v627 = vadd.f32 %v558, %v626
    %628 = vmatmul.f32.gmra.mxu0 %v456
    %v629 = vpop.f32.mrf.mxu0
    %v630 = vadd.f32 %v558, %v629
    %631 = vdwg.mxu0
    %632 = vmatpush.msra.mxu0 %v552
    %633 = vmatpush.msra.mxu0 %v549
    %634 = vmatpush.msra.mxu0 %v546
    %635 = vmatpush.msra.mxu0 %v543
    %636 = vmatpush.msra.mxu0 %v540
    %637 = vmatpush.msra.mxu0 %v537
    %638 = vmatpush.msra.mxu0 %v534
    %639 = vmatpush.msra.mxu0 %v531
    %640 = vmatpush.msra.mxu0 %v528
    %641 = vmatpush.msra.mxu0 %v525
    %642 = vmatpush.msra.mxu0 %v522
    %643 = vmatpush.msra.mxu0 %v519
    %644 = vmatpush.msra.mxu0 %v516
    %645 = vmatpush.msra.mxu0 %v513
    %646 = vmatpush.msra.mxu0 %v510
    %647 = vmatpush.msra.mxu0 %v507
    %648 = vmatmul.f32.gmra.mxu0 %v449
    %v649 = vpop.f32.mrf.mxu0
    %v650 = vadd.f32 %v627, %v649
    %651 = vmatmul.f32.gmra.mxu0 %v450
    %v652 = vpop.f32.mrf.mxu0
    %v653 = vadd.f32 %v630, %v652
    %654 = vdwg.mxu0
    %655 = vmatpush.msra.mxu0 %v505
    %656 = vmatpush.msra.mxu0 %v502
    %657 = vmatpush.msra.mxu0 %v499
    %658 = vmatpush.msra.mxu0 %v496
    %659 = vmatpush.msra.mxu0 %v493
    %660 = vmatpush.msra.mxu0 %v490
    %661 = vmatpush.msra.mxu0 %v487
    %662 = vmatpush.msra.mxu0 %v484
    %663 = vmatpush.msra.mxu0 %v481
    %664 = vmatpush.msra.mxu0 %v478
    %665 = vmatpush.msra.mxu0 %v475
    %666 = vmatpush.msra.mxu0 %v472
    %667 = vmatpush.msra.mxu0 %v469
    %668 = vmatpush.msra.mxu0 %v466
    %669 = vmatpush.msra.mxu0 %v463
    %670 = vmatpush.msra.mxu0 %v460
    %671 = vmatmul.f32.gmra.mxu0 %v455
    %v672 = vpop.f32.mrf.mxu0
    %v673 = vadd.f32 %v559, %v672
    %674 = vmatmul.f32.gmra.mxu0 %v456
    %v675 = vpop.f32.mrf.mxu0
    %v676 = vadd.f32 %v559, %v675
    %677 = vdwg.mxu0
    %678 = vmatpush.msra.mxu0 %v553
    %679 = vmatpush.msra.mxu0 %v550
    %680 = vmatpush.msra.mxu0 %v547
    %681 = vmatpush.msra.mxu0 %v544
    %682 = vmatpush.msra.mxu0 %v541
    %683 = vmatpush.msra.mxu0 %v538
    %684 = vmatpush.msra.mxu0 %v535
    %685 = vmatpush.msra.mxu0 %v532
    %686 = vmatpush.msra.mxu0 %v529
    %687 = vmatpush.msra.mxu0 %v526
    %688 = vmatpush.msra.mxu0 %v523
    %689 = vmatpush.msra.mxu0 %v520
    %690 = vmatpush.msra.mxu0 %v517
    %691 = vmatpush.msra.mxu0 %v514
    %692 = vmatpush.msra.mxu0 %v511
    %693 = vmatpush.msra.mxu0 %v508
    %694 = vmatmul.f32.gmra.mxu0 %v449
    %v695 = vpop.f32.mrf.mxu0
    %v696 = vadd.f32 %v673, %v695
    %697 = vmatmul.f32.gmra.mxu0 %v450
    %v698 = vpop.f32.mrf.mxu0
    %v699 = vadd.f32 %v676, %v698
    %700 = vdwg.mxu0
    %v701 = vtanh.pop %v604
    %v702 = vtanh.pop %v607
    %v703 = vxor.u32 %v650, 2147483648
    %v704 = vxor.u32 %v653, 2147483648
    %v705 = vmul.f32 %v703, 1.442695
    %v706 = vpow.pop %v705
    %v707 = vmul.f32 %v704, 1.442695
    %v708 = vpow.pop %v707
    %v709 = vadd.f32 %v706, 1.0
    %v710 = vadd.f32 %v708, 1.0
    %v711 = vrcp.pop %v709
    %v712 = vmul.f32 %v709, %v711
    %v713 = vsub.f32 1.0, %v712
    %v714 = vmul.f32 %v711, %v713
    %v715 = vadd.f32 %v711, %v714
    %vm716 = vweird.f32 %v709
    %vm717 = vweird.f32 %v711
    %vm718 = vmor %vm716, %vm717
    %v719 = vsel %vm718, %v711, %v715
    %v720 = vand.u32 2147483647, %v709
    %vm721 = vcmp.eq.f32.partialorder %v720, 8.507059e+37
    %v722 = vand.u32 %v709, 2147483648
    %v723 = vor.u32 1.1754944e-38, %v722
    %v724 = vsel %vm721, %v723, %v719
    %v725 = vmul.f32 1.0, %v724
    %v726 = vrcp.pop %v710
    %v727 = vmul.f32 %v710, %v726
    %v728 = vsub.f32 1.0, %v727
    %v729 = vmul.f32 %v726, %v728
    %v730 = vadd.f32 %v726, %v729
    %vm731 = vweird.f32 %v710
    %vm732 = vweird.f32 %v726
    %vm733 = vmor %vm731, %vm732
    %v734 = vsel %vm733, %v726, %v730
    %v735 = vand.u32 2147483647, %v710
    %vm736 = vcmp.eq.f32.partialorder %v735, 8.507059e+37
    %v737 = vand.u32 %v710, 2147483648
    %v738 = vor.u32 1.1754944e-38, %v737
    %v739 = vsel %vm736, %v738, %v734
    %v740 = vmul.f32 1.0, %v739
    %v741 = vxor.u32 %v696, 2147483648
    %v742 = vxor.u32 %v699, 2147483648
    %v743 = vmul.f32 %v741, 1.442695
    %v744 = vpow.pop %v743
    %v745 = vmul.f32 %v742, 1.442695
    %v746 = vpow.pop %v745
    %v747 = vadd.f32 %v744, 1.0
    %v748 = vadd.f32 %v746, 1.0
    %v749 = vrcp.pop %v747
    %v750 = vmul.f32 %v747, %v749
    %v751 = vsub.f32 1.0, %v750
    %v752 = vmul.f32 %v749, %v751
    %v753 = vadd.f32 %v749, %v752
    %vm754 = vweird.f32 %v747
    %vm755 = vweird.f32 %v749
    %vm756 = vmor %vm754, %vm755
    %v757 = vsel %vm756, %v749, %v753
    %v758 = vand.u32 2147483647, %v747
    %vm759 = vcmp.eq.f32.partialorder %v758, 8.507059e+37
    %v760 = vand.u32 %v747, 2147483648
    %v761 = vor.u32 1.1754944e-38, %v760
    %v762 = vsel %vm759, %v761, %v757
    %v763 = vmul.f32 1.0, %v762
    %v764 = vrcp.pop %v748
    %v765 = vmul.f32 %v748, %v764
    %v766 = vsub.f32 1.0, %v765
    %v767 = vmul.f32 %v764, %v766
    %v768 = vadd.f32 %v764, %v767
    %vm769 = vweird.f32 %v748
    %vm770 = vweird.f32 %v764
    %vm771 = vmor %vm769, %vm770
    %v772 = vsel %vm771, %v764, %v768
    %v773 = vand.u32 2147483647, %v748
    %vm774 = vcmp.eq.f32.partialorder %v773, 8.507059e+37
    %v775 = vand.u32 %v748, 2147483648
    %v776 = vor.u32 1.1754944e-38, %v775
    %v777 = vsel %vm774, %v776, %v772
    %v778 = vmul.f32 1.0, %v777
    %v779 = vmul.f32 %v725, %v447
    %v780 = vmul.f32 %v740, %v448
    %v781 = vsub.f32 1.0, %v725
    %v782 = vsub.f32 1.0, %v740
    %v783 = vmul.f32 %v781, %v701
    %v784 = vmul.f32 %v782, %v702
    %v785 = vadd.f32 %v779, %v783
    %v786 = vadd.f32 %v780, %v784
    %v787 = vmul.f32 %v763, %v785
    %v788 = vmul.f32 %v778, %v786
    %v789 = vld [vmem:[#allocation7] sm:$0xff]
    %v790 = vld [vmem:[#allocation7 + $0x8] sm:$0xff]
    %v791 = vmul.f32 %v787, %v789
    %v792 = vmul.f32 %v788, %v790
    %793 = vadd.xlane.f32.xlu0 %v791
    %v794 = vpop.xlane.xlu0 %793
    %795 = vadd.xlane.f32.xlu0 %v792
    %v796 = vpop.xlane.xlu0 %795
    %v797 = vrot.slane %v794, 4
    %v798 = vadd.f32 %v794, %v797
    %v799 = vrot.slane %v798, 2
    %v800 = vadd.f32 %v798, %v799
    %v801 = vrot.slane %v800, 1
    %v802 = vadd.f32 %v800, %v801
    %v803 = vrot.slane %v796, 4
    %v804 = vadd.f32 %v796, %v803
    %v805 = vrot.slane %v804, 2
    %v806 = vadd.f32 %v804, %v805
    %v807 = vrot.slane %v806, 1
    %v808 = vadd.f32 %v806, %v807
    %v809 = vld [vmem:[%s4] sm:$0x1]
    %v810 = vld [vmem:[%s4 + $0x1] sm:$0x1]
    %v811 = vadd.f32 %v802, %v809
    %v812 = vadd.f32 %v808, %v810
    %vm813 = vcmask 0
    %814 = vst.msk [vmem:[%s5] sm:$0x1] %vm813, %v811
    %815 = vst.msk [vmem:[%s5 + $0x1] sm:$0x1] %vm813, %v812
    // Predicated region
    $region38: #{tpu_custom_call.1} parent=1 // pred_check
      _
    $region39: #{tpu_custom_call.1} parent=1 // pred_check_branch
      %817 = sbr.rel (0) target = $region41
    $region40: #{tpu_custom_call.1} parent=1 // pred_region
      _
    $region41: #{tpu_custom_call.1} parent=1 // pred_fallthru
      _
    // Predicated region
    $region42: #{tpu_custom_call.1} parent=1 // pred_check
      _
    $region43: #{tpu_custom_call.1} parent=1 // pred_check_branch
      %819 = sbr.rel (0) target = $region45
    $region44: #{tpu_custom_call.1} parent=1 // pred_region
      _
    $region45: #{tpu_custom_call.1} parent=1 // pred_fallthru
      _
    %820 = vsyncpa [#allocation3], 1
    %821 = vsyncpa [#allocation5], 1
    %822 = vsyncpa [#allocation8], 1

</llo_original>
